<compile_context>
chip_gen: v7x
topology: tpu7x:2x2x1
jax: 0.10.0
libtpu: 0.0.40
codegen_flags: <defaults>
</compile_context>

<pallas_src>
import jax
import jax.numpy as jnp
from jax.experimental import pallas as pl
from jax.experimental.pallas import tpu as pltpu

# Set to jnp.bfloat16 on v5e/v6e for peak MXU throughput (loosen tolerances).
_MXU_DTYPE = jnp.float32


def _pda_kernel(x_ref, wp_ref, wn_ref, mu_ref, out_ref):
    # x_ref  : (C, HWp)  VMEM  -- one batch element, HWp = pad(H*W, 128)
    # wp_ref : (K, C)    VMEM  -- relu( fc_weights) / K
    # wn_ref : (K, C)    VMEM  -- relu(-fc_weights) / K
    # mu_ref : (1,)      SMEM  -- scalar threshold fraction
    # out_ref: (C, HWp)  VMEM
    x = x_ref[...]                                   # keep native width
    mu = mu_ref[0]

    xp = jnp.maximum(x, 0.0).astype(_MXU_DTYPE)      # relu(x)
    xn = jnp.maximum(-x, 0.0).astype(_MXU_DTYPE)     # relu(-x)

    # cam_all[k, s] = sum_c relu(x[c, s] * w[k, c]) / K   (weights pre-scaled)
    cam = (jnp.dot(wp_ref[...].astype(_MXU_DTYPE), xp,
                   preferred_element_type=jnp.float32) +
           jnp.dot(wn_ref[...].astype(_MXU_DTYPE), xn,
                   preferred_element_type=jnp.float32))          # (K, HWp) f32

    cam_max = jnp.max(cam, axis=-1, keepdims=True)               # (K, 1)
    thr = cam_max * mu
    cam_drop = jnp.where(cam > thr, 0.0, cam)                    # (K, HWp)

    # Weights were scaled by 1/K, so the plain K-sum IS the mean.
    mean_drop = jnp.sum(cam_drop, axis=0, keepdims=True)         # (1, HWp)

    out_ref[...] = (x * mean_drop).astype(out_ref.dtype)


def pda_forward(x, fc_weights, mu):
    """x: (N, C, H, W), fc_weights: (K, C), mu: python float."""
    N, C, H, W = x.shape
    K = fc_weights.shape[0]
    HW = H * W
    HWp = ((HW + 127) // 128) * 128                  # lane-dense padding

    x2 = x.reshape(N, C, HW)
    if HWp != HW:
        x2 = jnp.pad(x2, ((0, 0), (0, 0), (0, HWp - HW)))

    # Fold the 1/K normalization into the weights (threshold compare is
    # invariant under positive scaling), and precompute relu(+/-W) once.
    wf = fc_weights.astype(jnp.float32) * (1.0 / K)
    wp = jnp.maximum(wf, 0.0)
    wn = jnp.maximum(-wf, 0.0)
    mu_arr = jnp.asarray([mu], dtype=jnp.float32)

    # VMEM budget: double-buffered in/out x blocks + weights + cam tiles.
    itemsize = jnp.dtype(x.dtype).itemsize
    x_blk = C * HWp * itemsize
    w_bytes = 2 * K * C * 4
    cam_bytes = K * HWp * 4
    vmem_budget = 4 * x_blk + 2 * w_bytes + 4 * cam_bytes + (4 << 20)
    vmem_budget = int(min(max(vmem_budget, 32 << 20), 64 << 20))

    out2 = pl.pallas_call(
        _pda_kernel,
        out_shape=jax.ShapeDtypeStruct((N, C, HWp), x.dtype),
        grid_spec=pltpu.PrefetchScalarGridSpec(
            num_scalar_prefetch=0,
            grid=(N,),
            in_specs=[
                pl.BlockSpec((None, C, HWp), lambda n: (n, 0, 0)),
                pl.BlockSpec((K, C), lambda n: (0, 0)),
                pl.BlockSpec((K, C), lambda n: (0, 0)),
                pl.BlockSpec(memory_space=pltpu.MemorySpace.SMEM),
            ],
            out_specs=pl.BlockSpec((None, C, HWp), lambda n: (n, 0, 0)),
        ),
        compiler_params=pltpu.CompilerParams(
            dimension_semantics=("parallel",),
            vmem_limit_bytes=vmem_budget),
    )(x2, wp, wn, mu_arr)

    out2 = out2[:, :, :HW]
    return out2.reshape(N, C, H, W)


def pda_reference(x, fc_weights, mu):
    """Pure-JAX reference mirroring the PyTorch forward."""
    N, C, H, W = x.shape
    K = fc_weights.shape[0]
    mean_drop_cam = jnp.zeros((N, H, W), jnp.float32)
    for k in range(K):
        w = fc_weights[k].reshape(1, C, 1, 1)
        cam = jnp.sum(jax.nn.relu(x * w), axis=1)                 # (N, H, W)
        cam_max = jnp.max(cam.reshape(N, -1), axis=-1).reshape(N, 1, 1)
        thr = cam_max * mu
        cam_drop = jnp.where(cam > thr, jnp.zeros_like(cam), cam)
        mean_drop_cam = mean_drop_cam + cam_drop
    mean_drop_cam = mean_drop_cam / K
    return x * mean_drop_cam[:, None, :, :]


if __name__ == "__main__":
    key = jax.random.PRNGKey(0)

    # (N, C, H, W, K, mu): second case exercises the HW-padding path (49->128).
    for (N, C, H, W, K, mu) in [(2, 4, 16, 16, 8, 0.5),
                                (2, 4, 7, 7, 5, 0.6)]:
        key, kx, kw = jax.random.split(key, 3)
        x = jax.random.normal(kx, (N, C, H, W), dtype=jnp.float32)
        fc_weights = jax.random.normal(kw, (K, C), dtype=jnp.float32)

        out = pda_forward(x, fc_weights, mu)
        out = jax.block_until_ready(out)

        ref = pda_reference(x, fc_weights, mu)
        assert out.shape == (N, C, H, W)
        assert jnp.allclose(out, ref, atol=1e-5, rtol=1e-5), "mismatch vs reference"

    print("KERNEL_OK")
</pallas_src>

<mosaic_0001>
module attributes {stable_mosaic.version = 11 : i64} {
  func.func @_pda_kernel(%arg0: i32, %arg1: memref<1x4x256xf32, #tpu.memory_space<vmem>>, %arg2: memref<8x4xf32, #tpu.memory_space<vmem>>, %arg3: memref<8x4xf32, #tpu.memory_space<vmem>>, %arg4: memref<1xf32, #tpu.memory_space<smem>>, %arg5: memref<1x4x256xf32, #tpu.memory_space<vmem>>) attributes {dimension_semantics = [#tpu.dimension_semantics<parallel>], iteration_bounds = array<i64: 2>, scalar_prefetch = 0 : i64, scratch_operands = 0 : i64, tpu.core_type = #tpu.core_type<tc>, window_params = [{transform_indices = @transform_0, window_bounds = array<i64: 1, 4, 256>}, {pipeline_mode = #tpu.pipeline_mode<synchronous>, transform_indices = @transform_1, window_bounds = array<i64: 8, 4>}, {pipeline_mode = #tpu.pipeline_mode<synchronous>, transform_indices = @transform_2, window_bounds = array<i64: 8, 4>}, {transform_indices = @transform_3, window_bounds = array<i64: 1>}, {transform_indices = @transform_4, window_bounds = array<i64: 1, 4, 256>}]} {
    %c0 = arith.constant 0 : index
    %c0_0 = arith.constant 0 : index
    %c0_1 = arith.constant 0 : index
    %0 = vector.load %arg1[%c0, %c0_0, %c0_1] : memref<1x4x256xf32, #tpu.memory_space<vmem>>, vector<1x4x256xf32>
    %1 = vector.shape_cast %0 : vector<1x4x256xf32> to vector<4x256xf32>
    %c0_2 = arith.constant 0 : index
    %2 = memref.load %arg4[%c0_2] : memref<1xf32, #tpu.memory_space<smem>>
    %cst = arith.constant 0.000000e+00 : f32
    %3 = vector.broadcast %cst : f32 to vector<4x256xf32>
    %4 = arith.maximumf %1, %3 : vector<4x256xf32>
    %cst_3 = arith.constant 0.000000e+00 : f32
    %5 = vector.broadcast %cst_3 : f32 to vector<4x256xf32>
    %6 = arith.subf %5, %1 : vector<4x256xf32>
    %cst_4 = arith.constant 0.000000e+00 : f32
    %7 = vector.broadcast %cst_4 : f32 to vector<4x256xf32>
    %8 = arith.maximumf %6, %7 : vector<4x256xf32>
    %c0_5 = arith.constant 0 : index
    %c0_6 = arith.constant 0 : index
    %9 = vector.load %arg2[%c0_5, %c0_6] : memref<8x4xf32, #tpu.memory_space<vmem>>, vector<8x4xf32>
    %cst_7 = arith.constant dense<0.000000e+00> : vector<8x256xf32>
    %10 = tpu.matmul %9, %4, %cst_7 {dimension_numbers = #tpu.dot_dimension_numbers<[1], [0], [0], [1], [0, 0, 1, 1], [], []>} : vector<8x4xf32>, vector<4x256xf32>, vector<8x256xf32> -> vector<8x256xf32>
    %c0_8 = arith.constant 0 : index
    %c0_9 = arith.constant 0 : index
    %11 = vector.load %arg3[%c0_8, %c0_9] : memref<8x4xf32, #tpu.memory_space<vmem>>, vector<8x4xf32>
    %cst_10 = arith.constant dense<0.000000e+00> : vector<8x256xf32>
    %12 = tpu.matmul %11, %8, %cst_10 {dimension_numbers = #tpu.dot_dimension_numbers<[1], [0], [0], [1], [0, 0, 1, 1], [], []>} : vector<8x4xf32>, vector<4x256xf32>, vector<8x256xf32> -> vector<8x256xf32>
    %13 = arith.addf %10, %12 : vector<8x256xf32>
    %cst_11 = arith.constant dense<0xFF800000> : vector<8xf32>
    %14 = vector.multi_reduction <maximumf>, %13, %cst_11 [1] : vector<8x256xf32> to vector<8xf32>
    %15 = vector.shape_cast %14 : vector<8xf32> to vector<8x1xf32>
    %16 = vector.broadcast %2 : f32 to vector<8x1xf32>
    %17 = arith.mulf %15, %16 : vector<8x1xf32>
    %18 = vector.broadcast %17 : vector<8x1xf32> to vector<8x256xf32>
    %19 = arith.cmpf ogt, %13, %18 : vector<8x256xf32>
    %cst_12 = arith.constant 0.000000e+00 : f32
    %20 = vector.broadcast %cst_12 : f32 to vector<8x256xf32>
    %21 = arith.select %19, %20, %13 : vector<8x256xi1>, vector<8x256xf32>
    %cst_13 = arith.constant dense<0.000000e+00> : vector<256xf32>
    %22 = vector.multi_reduction <add>, %21, %cst_13 [0] : vector<8x256xf32> to vector<256xf32>
    %23 = vector.shape_cast %22 : vector<256xf32> to vector<1x256xf32>
    %24 = vector.broadcast %23 : vector<1x256xf32> to vector<4x256xf32>
    %25 = arith.mulf %1, %24 : vector<4x256xf32>
    %c0_14 = arith.constant 0 : index
    %c0_15 = arith.constant 0 : index
    %c0_16 = arith.constant 0 : index
    %26 = vector.load %arg5[%c0_14, %c0_15, %c0_16] : memref<1x4x256xf32, #tpu.memory_space<vmem>>, vector<1x4x256xf32>
    %27 = vector.shape_cast %26 : vector<1x4x256xf32> to vector<4x256xf32>
    %28 = vector.shape_cast %25 : vector<4x256xf32> to vector<1x4x256xf32>
    tpu.vector_store %arg5[%c0_14, %c0_15, %c0_16], %28 {strides = array<i32>} : memref<1x4x256xf32, #tpu.memory_space<vmem>>, vector<1x4x256xf32>,
    return
  }
  func.func @transform_0(%arg0: i32) -> (i32, i32, i32) {
    %c0_i32 = arith.constant 0 : i32
    %c0_i32_0 = arith.constant 0 : i32
    %c0_i32_1 = arith.constant 0 : i32
    return %arg0, %c0_i32, %c0_i32_0 : i32, i32, i32
  }
  func.func @transform_1(%arg0: i32) -> (i32, i32) {
    %c0_i32 = arith.constant 0 : i32
    %c0_i32_0 = arith.constant 0 : i32
    %c0_i32_1 = arith.constant 0 : i32
    return %c0_i32, %c0_i32_0 : i32, i32
  }
  func.func @transform_2(%arg0: i32) -> (i32, i32) {
    %c0_i32 = arith.constant 0 : i32
    %c0_i32_0 = arith.constant 0 : i32
    %c0_i32_1 = arith.constant 0 : i32
    return %c0_i32, %c0_i32_0 : i32, i32
  }
  func.func @transform_3(%arg0: i32) -> i32 {
    %c0_i32 = arith.constant 0 : i32
    %c0_i32_0 = arith.constant 0 : i32
    return %c0_i32 : i32
  }
  func.func @transform_4(%arg0: i32) -> (i32, i32, i32) {
    %c0_i32 = arith.constant 0 : i32
    %c0_i32_0 = arith.constant 0 : i32
    %c0_i32_1 = arith.constant 0 : i32
    return %arg0, %c0_i32, %c0_i32_0 : i32, i32, i32
  }
}

</mosaic_0001>

<llo_original>
// kernel: tpu_custom_call.1
$region0: #{tpu_custom_call.1}
  #allocation0 [shape = 'u32[]', space=smem, size = 0x4, offset = 0x4, fixed_abs, tag = 'smem constant byte address 0x4 - core index']
  #allocation1 [shape = 'u32[144,128]{1,0:T(1,128)}', space=vmem, size = 0x12000, scoped, tag = 'internal scratch']
  #allocation2 [shape = 'f32[1]{0:T(128)S(6)}', space=smem, size = 0x200, scoped, tag = 'scoped memory for tpu_custom_call.1']
  %s0 = inlined_call_operand.vmem [shape: f32[2,4,256], index: 0, kind: input, shape index: {}]
  %s1 = inlined_call_operand.vmem [shape: f32[8,4], index: 1, kind: input, shape index: {}]
  %s2 = inlined_call_operand.vmem [shape: f32[8,4], index: 2, kind: input, shape index: {}]
  %s3 = inlined_call_operand.<no memory space> [shape: f32[1], index: 3, kind: input, shape index: {}]
  %s4 = inlined_call_operand.hbm [shape: f32[2,4,256], index: 4, kind: output, shape index: {}]
  %s5 = sld [smem:[#allocation0]]
  $region49: #{tpu_custom_call.1} parent=0
    _
  %s7 = ssub.s32 1, %s5
  %s8 = scalar_select 0, %s7, %s5
  %9 = sst [smem:[#allocation2]] %s3
  $region1: #{tpu_custom_call.1} parent=0
    #allocation3 [shape = 'u8[8192]{0}', space=vmem, size = 0x2000, scoped, tag = 'output window, operand 0']
    #allocation4 [shape = 's32[2]{0}', space=sflag, size = 0x8, scoped, tag = 'scoped memory for tpu_custom_call.1']
    %10 = vsyncpa [#allocation4], 0
    %s11 = scalar_lea.sflag [#allocation4], 1
    %12 = vsyncpa %s11, 0
    loop: start=0, step=1, limit=4
    $region2: #{tpu_custom_call.1} parent=1 // loop_pre_header
      _
    $region3: #{tpu_custom_call.1} parent=1 // loop_header
      %s14 = sphi 0, %s18
      %p15 = scmp.ge.s32.totalorder %s14, 4
      %s24 = sphi 0, %s26
      %s27 = sphi 0, %s24
      %s28 = sphi 0, %s27
      %s44 = sphi 0, %s28
      %s48 = sphi 0, %s48
      %s50 = sphi 0, %s48
      %s51 = sphi 0, %s50
      %s65 = sphi 0, %s51
      %s69 = sphi 0, %s69
      %s71 = sphi 0, %s69
      %s72 = sphi 0, %s71
      %s86 = sphi 0, %s72
      %s90 = sphi 0, %s90
      %s92 = sphi 0, %s90
      %s93 = sphi 0, %s92
      %s107 = sphi 0, %s93
      %s113 = sphi 0, %s115
      %s116 = sphi 0, %s113
      %s117 = sphi 0, %s116
      %s133 = sphi 0, %s117
    $region4: #{tpu_custom_call.1} parent=1 // loop_header_branch
      %17 = sbr.rel (%p15) target = $region8
    $region5: #{tpu_custom_call.1} parent=1 // loop_body
      %s19 = ssub.s32 %s14, 1
      %s20 = ssub.s32 %s14, 2
      %s21 = sadd.s32 %s14, 1
      %s22 = ssub.s32 %s14, %s21
      %p23 = scmp.eq.s32.totalorder %s22, 0
      %s25 = sadd.s32 %s24, 1
      %s26 = scalar_select %p23, %s24, %s25
      %p29 = pneg %p23
      %p30 = scmp.eq.s32.totalorder %s14, 1
      %p31 = por %p29, %p30
      %p32 = scmp.ne.s32.totalorder %s24, %s27
      %p33 = scmp.eq.s32.totalorder %s14, 0
      %p34 = por %p32, %p33
      %p35 = scmp.ne.s32.totalorder %s24, %s27
      %p36 = scmp.eq.s32.totalorder %s19, 1
      %p37 = por %p35, %p36
      %p38 = scmp.ne.s32.totalorder %s27, %s28
      %p39 = scmp.eq.s32.totalorder %s19, 0
      %p40 = por %p38, %p39
      %p41 = scmp.ne.s32.totalorder %s27, %s28
      %p42 = scmp.eq.s32.totalorder %s20, 1
      %p43 = por %p41, %p42
      %p45 = scmp.ne.s32.totalorder %s28, %s44
      %p46 = scmp.eq.s32.totalorder %s20, 0
      %p47 = por %p45, %p46
      %s49 = sadd.s32 %s48, 1
      %p52 = scmp.eq.s32.totalorder %s14, 1
      %p53 = scmp.ne.s32.totalorder %s48, %s50
      %p54 = scmp.eq.s32.totalorder %s14, 0
      %p55 = por %p53, %p54
      %p56 = scmp.ne.s32.totalorder %s48, %s50
      %p57 = scmp.eq.s32.totalorder %s19, 1
      %p58 = por %p56, %p57
      %p59 = scmp.ne.s32.totalorder %s50, %s51
      %p60 = scmp.eq.s32.totalorder %s19, 0
      %p61 = por %p59, %p60
      %p62 = scmp.ne.s32.totalorder %s50, %s51
      %p63 = scmp.eq.s32.totalorder %s20, 1
      %p64 = por %p62, %p63
      %p66 = scmp.ne.s32.totalorder %s51, %s65
      %p67 = scmp.eq.s32.totalorder %s20, 0
      %p68 = por %p66, %p67
      %s70 = sadd.s32 %s69, 1
      %p73 = scmp.eq.s32.totalorder %s14, 1
      %p74 = scmp.ne.s32.totalorder %s69, %s71
      %p75 = scmp.eq.s32.totalorder %s14, 0
      %p76 = por %p74, %p75
      %p77 = scmp.ne.s32.totalorder %s69, %s71
      %p78 = scmp.eq.s32.totalorder %s19, 1
      %p79 = por %p77, %p78
      %p80 = scmp.ne.s32.totalorder %s71, %s72
      %p81 = scmp.eq.s32.totalorder %s19, 0
      %p82 = por %p80, %p81
      %p83 = scmp.ne.s32.totalorder %s71, %s72
      %p84 = scmp.eq.s32.totalorder %s20, 1
      %p85 = por %p83, %p84
      %p87 = scmp.ne.s32.totalorder %s72, %s86
      %p88 = scmp.eq.s32.totalorder %s20, 0
      %p89 = por %p87, %p88
      %s91 = sadd.s32 %s90, 1
      %p94 = scmp.eq.s32.totalorder %s14, 1
      %p95 = scmp.ne.s32.totalorder %s90, %s92
      %p96 = scmp.eq.s32.totalorder %s14, 0
      %p97 = por %p95, %p96
      %p98 = scmp.ne.s32.totalorder %s90, %s92
      %p99 = scmp.eq.s32.totalorder %s19, 1
      %p100 = por %p98, %p99
      %p101 = scmp.ne.s32.totalorder %s92, %s93
      %p102 = scmp.eq.s32.totalorder %s19, 0
      %p103 = por %p101, %p102
      %p104 = scmp.ne.s32.totalorder %s92, %s93
      %p105 = scmp.eq.s32.totalorder %s20, 1
      %p106 = por %p104, %p105
      %p108 = scmp.ne.s32.totalorder %s93, %s107
      %p109 = scmp.eq.s32.totalorder %s20, 0
      %p110 = por %p108, %p109
      %s111 = ssub.s32 %s14, %s21
      %p112 = scmp.eq.s32.totalorder %s111, 0
      %s114 = sadd.s32 %s113, 1
      %s115 = scalar_select %p112, %s113, %s114
      %p118 = pneg %p112
      %p119 = scmp.eq.s32.totalorder %s14, 1
      %p120 = por %p118, %p119
      %p121 = scmp.ne.s32.totalorder %s113, %s116
      %p122 = scmp.eq.s32.totalorder %s14, 0
      %p123 = por %p121, %p122
      %p124 = scmp.ne.s32.totalorder %s113, %s116
      %p125 = scmp.eq.s32.totalorder %s19, 1
      %p126 = por %p124, %p125
      %p127 = scmp.ne.s32.totalorder %s116, %s117
      %p128 = scmp.eq.s32.totalorder %s19, 0
      %p129 = por %p127, %p128
      %p130 = scmp.ne.s32.totalorder %s116, %s117
      %p131 = scmp.eq.s32.totalorder %s20, 1
      %p132 = por %p130, %p131
      %p134 = scmp.ne.s32.totalorder %s117, %s133
      %p135 = scmp.eq.s32.totalorder %s20, 0
      %p136 = por %p134, %p135
      %p137 = scmp.le.s32.totalorder 1, %s14
      %p138 = scmp.lt.s32.totalorder %s14, 3
      %p139 = pnand %p137, %p138
      %p140 = pneg %p139
      // Predicated region
      $region9: #{tpu_custom_call.1} parent=5 // pred_check
        _
      $region10: #{tpu_custom_call.1} parent=5 // pred_check_branch
        %142 = sbr.rel (%p139) target = $region12
      $region11: #{tpu_custom_call.1} parent=5 // pred_region
        %s143 = ssub.s32 %s14, 1
        // Predicated region
        $region13: #{tpu_custom_call.1} parent=11 // pred_check
          %p144 = pneg %p61
        $region14: #{tpu_custom_call.1} parent=11 // pred_check_branch
          %146 = sbr.rel (%p144) target = $region16
        $region15: #{tpu_custom_call.1} parent=11 // pred_region
          _
        $region16: #{tpu_custom_call.1} parent=11 // pred_fallthru
          _
        // Predicated region
        $region17: #{tpu_custom_call.1} parent=11 // pred_check
          %p147 = pneg %p82
        $region18: #{tpu_custom_call.1} parent=11 // pred_check_branch
          %149 = sbr.rel (%p147) target = $region20
        $region19: #{tpu_custom_call.1} parent=11 // pred_region
          _
        $region20: #{tpu_custom_call.1} parent=11 // pred_fallthru
          _
        // Predicated region
        $region21: #{tpu_custom_call.1} parent=11 // pred_check
          %p150 = pneg %p103
        $region22: #{tpu_custom_call.1} parent=11 // pred_check_branch
          %152 = sbr.rel (%p150) target = $region24
        $region23: #{tpu_custom_call.1} parent=11 // pred_region
          _
        $region24: #{tpu_custom_call.1} parent=11 // pred_fallthru
          _
      $region12: #{tpu_custom_call.1} parent=5 // pred_fallthru
        _
      %p153 = scmp.lt.s32.totalorder %s14, 2
      // Predicated region
      $region25: #{tpu_custom_call.1} parent=5 // pred_check
        %p154 = pneg %p153
      $region26: #{tpu_custom_call.1} parent=5 // pred_check_branch
        %156 = sbr.rel (%p154) target = $region28
      $region27: #{tpu_custom_call.1} parent=5 // pred_region
        // Predicated region
        $region29: #{tpu_custom_call.1} parent=27 // pred_check
          %p157 = pneg %p34
        $region30: #{tpu_custom_call.1} parent=27 // pred_check_branch
          %159 = sbr.rel (%p157) target = $region32
        $region31: #{tpu_custom_call.1} parent=27 // pred_region
          %p160 = scmp.lt.s32.totalorder %s14, 1
          %s161 = scalar_select %p160, %s14, 1
          %s162 = smul.addr %s161, 2
          %s163 = smul.addr %s162, 4
          %s164 = scalar_lea.vmem %s0, %s163
        $region32: #{tpu_custom_call.1} parent=27 // pred_fallthru
          _
      $region28: #{tpu_custom_call.1} parent=5 // pred_fallthru
        _
      %p165 = scmp.le.s32.totalorder 1, %s14
      %p166 = scmp.lt.s32.totalorder %s14, 3
      %p167 = pnand %p165, %p166
      %p168 = pneg %p167
      // Predicated region
      $region33: #{tpu_custom_call.1} parent=5 // pred_check
        _
      $region34: #{tpu_custom_call.1} parent=5 // pred_check_branch
        %170 = sbr.rel (%p167) target = $region36
      $region35: #{tpu_custom_call.1} parent=5 // pred_region
        %s171 = ssub.s32 %s14, 1
        %p172 = scmp.lt.s32.totalorder %s19, 1
        %s173 = scalar_select %p172, %s19, 1
        %s174 = smul.addr %s173, 2
        %s175 = smul.addr %s174, 4
        %s176 = scalar_lea.vmem %s0, %s175
        %p177 = pneg %p40
        %p178 = pneg %p37
        %p179 = pneg %p61
        %p180 = pneg %p58
        %p181 = pneg %p82
        %p182 = pneg %p79
        %p183 = pneg %p103
        %p184 = pneg %p100
        %p185 = pneg %p129
        %p186 = pneg %p126
        %s187 = sand.u32 %s116, 1
        %s188 = scalar_lea.sflag [#allocation4], %s187
        %s189 = sand.u32 %s116, 1
        %s190 = smul.addr %s189, 8
        %s191 = scalar_lea.vmem [#allocation3], %s190
        %p192 = scmp.lt.s32.totalorder %s19, 1
        %s193 = scalar_select %p192, %s19, 1
        %s194 = smul.addr %s193, 2
        %s195 = smul.addr %s194, 4
        %s196 = scalar_lea.vmem %s0, %s195
        %v197 = vld [vmem:[%s196] sm:$0xff]
        %s198 = sld [smem:[#allocation2]]
        %v199 = vmax.f32 %v197, 0.0
        %v200 = vsub.f32 0.0, %v197
        %v201 = vmax.f32 %v200, 0.0
        %v202 = vld [vmem:[%s1] sm:$0xff]
        %v203 = vld [vmem:[%s2] sm:$0xff]
        %v205 = vcombine.high %v201, %v201
        %vm206 = vcmask 31744
        %v208 = vsel %vm206, %v203, 0
        %vm210 = vcmask 1043456
        %v211 = vsel %vm210, %v201, 0
        %v213 = vsel %vm210, %v205, 0
        %215 = vmatprep.subr.mxu0 %v213
        %216 = vmatpush1.msra.mxu0 %v211
        %217 = vmatprep.subr.mxu0 0.0
        %218 = vmatpush1.msra.mxu0 0.0
        %219 = vmatprep.subr.mxu0 0.0
        %220 = vmatpush1.msra.mxu0 0.0
        %221 = vmatprep.subr.mxu0 0.0
        %222 = vmatpush1.msra.mxu0 0.0
        %223 = vmatprep.subr.mxu0 0.0
        %224 = vmatpush1.msra.mxu0 0.0
        %225 = vmatprep.subr.mxu0 0.0
        %226 = vmatpush1.msra.mxu0 0.0
        %227 = vmatprep.subr.mxu0 0.0
        %228 = vmatpush1.msra.mxu0 0.0
        %229 = vmatprep.subr.mxu0 0.0
        %230 = vmatpush1.msra.mxu0 0.0
        %231 = vmatprep.subr.mxu0 0.0
        %232 = vmatpush1.msra.mxu0 0.0
        %233 = vmatprep.subr.mxu0 0.0
        %234 = vmatpush1.msra.mxu0 0.0
        %235 = vmatprep.subr.mxu0 0.0
        %236 = vmatpush1.msra.mxu0 0.0
        %237 = vmatprep.subr.mxu0 0.0
        %238 = vmatpush1.msra.mxu0 0.0
        %239 = vmatprep.subr.mxu0 0.0
        %240 = vmatpush1.msra.mxu0 0.0
        %241 = vmatprep.subr.mxu0 0.0
        %242 = vmatpush1.msra.mxu0 0.0
        %243 = vmatprep.subr.mxu0 0.0
        %244 = vmatpush1.msra.mxu0 0.0
        %245 = vmatprep.subr.mxu0 0.0
        %246 = vmatpush1.msra.mxu0 0.0
        %247 = vmatprep.subr.mxu0 0.0
        %248 = vmatpush1.msra.mxu0 0.0
        %249 = vmatprep.subr.mxu0 0.0
        %250 = vmatpush1.msra.mxu0 0.0
        %251 = vmatprep.subr.mxu0 0.0
        %252 = vmatpush1.msra.mxu0 0.0
        %253 = vmatprep.subr.mxu0 0.0
        %254 = vmatpush1.msra.mxu0 0.0
        %255 = vmatprep.subr.mxu0 0.0
        %256 = vmatpush1.msra.mxu0 0.0
        %257 = vmatprep.subr.mxu0 0.0
        %258 = vmatpush1.msra.mxu0 0.0
        %259 = vmatprep.subr.mxu0 0.0
        %260 = vmatpush1.msra.mxu0 0.0
        %261 = vmatprep.subr.mxu0 0.0
        %262 = vmatpush1.msra.mxu0 0.0
        %263 = vmatprep.subr.mxu0 0.0
        %264 = vmatpush1.msra.mxu0 0.0
        %265 = vmatprep.subr.mxu0 0.0
        %266 = vmatpush1.msra.mxu0 0.0
        %267 = vmatprep.subr.mxu0 0.0
        %268 = vmatpush1.msra.mxu0 0.0
        %269 = vmatprep.subr.mxu0 0.0
        %270 = vmatpush1.msra.mxu0 0.0
        %271 = vmatprep.subr.mxu0 0.0
        %272 = vmatpush1.msra.mxu0 0.0
        %273 = vmatprep.subr.mxu0 0.0
        %274 = vmatpush1.msra.mxu0 0.0
        %275 = vmatprep.subr.mxu0 0.0
        %276 = vmatpush1.msra.mxu0 0.0
        %277 = vmatprep.subr.mxu0 0.0
        %278 = vmatpush1.msra.mxu0 0.0
        %279 = vmatprep.mubr.f32.mxu0 0.0
        %280 = vmatmul.mubr.f32.gmra.mrb[0].mxu0 %v208
        %v281 = vpop.f32.mrb[0].mxu0
        %v282 = vadd.f32 0.0, %v281
        %v283 = vpop.f32.mrb[0].mxu0
        %v284 = vadd.f32 0.0, %v283
        %285 = vdwg.mxu0
        %v287 = vcombine.high %v199, %v199
        %v289 = vsel %vm206, %v202, 0
        %v291 = vsel %vm210, %v199, 0
        %v293 = vsel %vm210, %v287, 0
        %295 = vmatprep.subr.mxu0 %v293
        %296 = vmatpush1.msra.mxu0 %v291
        %297 = vmatprep.subr.mxu0 0.0
        %298 = vmatpush1.msra.mxu0 0.0
        %299 = vmatprep.subr.mxu0 0.0
        %300 = vmatpush1.msra.mxu0 0.0
        %301 = vmatprep.subr.mxu0 0.0
        %302 = vmatpush1.msra.mxu0 0.0
        %303 = vmatprep.subr.mxu0 0.0
        %304 = vmatpush1.msra.mxu0 0.0
        %305 = vmatprep.subr.mxu0 0.0
        %306 = vmatpush1.msra.mxu0 0.0
        %307 = vmatprep.subr.mxu0 0.0
        %308 = vmatpush1.msra.mxu0 0.0
        %309 = vmatprep.subr.mxu0 0.0
        %310 = vmatpush1.msra.mxu0 0.0
        %311 = vmatprep.subr.mxu0 0.0
        %312 = vmatpush1.msra.mxu0 0.0
        %313 = vmatprep.subr.mxu0 0.0
        %314 = vmatpush1.msra.mxu0 0.0
        %315 = vmatprep.subr.mxu0 0.0
        %316 = vmatpush1.msra.mxu0 0.0
        %317 = vmatprep.subr.mxu0 0.0
        %318 = vmatpush1.msra.mxu0 0.0
        %319 = vmatprep.subr.mxu0 0.0
        %320 = vmatpush1.msra.mxu0 0.0
        %321 = vmatprep.subr.mxu0 0.0
        %322 = vmatpush1.msra.mxu0 0.0
        %323 = vmatprep.subr.mxu0 0.0
        %324 = vmatpush1.msra.mxu0 0.0
        %325 = vmatprep.subr.mxu0 0.0
        %326 = vmatpush1.msra.mxu0 0.0
        %327 = vmatprep.subr.mxu0 0.0
        %328 = vmatpush1.msra.mxu0 0.0
        %329 = vmatprep.subr.mxu0 0.0
        %330 = vmatpush1.msra.mxu0 0.0
        %331 = vmatprep.subr.mxu0 0.0
        %332 = vmatpush1.msra.mxu0 0.0
        %333 = vmatprep.subr.mxu0 0.0
        %334 = vmatpush1.msra.mxu0 0.0
        %335 = vmatprep.subr.mxu0 0.0
        %336 = vmatpush1.msra.mxu0 0.0
        %337 = vmatprep.subr.mxu0 0.0
        %338 = vmatpush1.msra.mxu0 0.0
        %339 = vmatprep.subr.mxu0 0.0
        %340 = vmatpush1.msra.mxu0 0.0
        %341 = vmatprep.subr.mxu0 0.0
        %342 = vmatpush1.msra.mxu0 0.0
        %343 = vmatprep.subr.mxu0 0.0
        %344 = vmatpush1.msra.mxu0 0.0
        %345 = vmatprep.subr.mxu0 0.0
        %346 = vmatpush1.msra.mxu0 0.0
        %347 = vmatprep.subr.mxu0 0.0
        %348 = vmatpush1.msra.mxu0 0.0
        %349 = vmatprep.subr.mxu0 0.0
        %350 = vmatpush1.msra.mxu0 0.0
        %351 = vmatprep.subr.mxu0 0.0
        %352 = vmatpush1.msra.mxu0 0.0
        %353 = vmatprep.subr.mxu0 0.0
        %354 = vmatpush1.msra.mxu0 0.0
        %355 = vmatprep.subr.mxu0 0.0
        %356 = vmatpush1.msra.mxu0 0.0
        %357 = vmatprep.subr.mxu0 0.0
        %358 = vmatpush1.msra.mxu0 0.0
        %359 = vmatprep.mubr.f32.mxu0 0.0
        %360 = vmatmul.mubr.f32.gmra.mrb[0].mxu0 %v289
        %v361 = vpop.f32.mrb[0].mxu0
        %v362 = vadd.f32 %v282, %v361
        %v363 = vpop.f32.mrb[0].mxu0
        %v364 = vadd.f32 %v284, %v363
        %365 = vdwg.mxu0
        %v366 = vmax.f32 %v362, %v364
        %367 = vmax.xlane.f32.xlu0 %v366
        %v368 = vpop.xlane.xlu0 %367
        %v369 = vstv %s198
        %v370 = vmul.f32 %v368, %v369
        %vm371 = vcmp.gt.f32.partialorder %v362, %v370
        %vm372 = vcmp.gt.f32.partialorder %v364, %v370
        %v373 = vsel %vm371, 0.0, %v362
        %v374 = vsel %vm372, 0.0, %v364
        %v375 = vrot.slane %v373, 4
        %v376 = vadd.f32 %v373, %v375
        %v377 = vrot.slane %v376, 2
        %v378 = vadd.f32 %v376, %v377
        %v379 = vrot.slane %v378, 1
        %v380 = vadd.f32 %v378, %v379
        %v381 = vrot.slane %v374, 4
        %v382 = vadd.f32 %v374, %v381
        %v383 = vrot.slane %v382, 2
        %v384 = vadd.f32 %v382, %v383
        %v385 = vrot.slane %v384, 1
        %v386 = vadd.f32 %v384, %v385
        %v389 = vcombine.low %v380, %v386
        %v391 = vmul.f32 %v197, %v389
        %392 = vst [vmem:[%s191] sm:$0xff] %v391
        %s393 = sand.u32 %s116, 1
        %s394 = scalar_lea.sflag [#allocation4], %s393
        %s395 = sand.u32 %s116, 1
        %s396 = smul.addr %s395, 8
        %s397 = scalar_lea.vmem [#allocation3], %s396
        // Predicated region
        $region37: #{tpu_custom_call.1} parent=35 // pred_check
          %p398 = pneg %p126
        $region38: #{tpu_custom_call.1} parent=35 // pred_check_branch
          %400 = sbr.rel (%p398) target = $region40
        $region39: #{tpu_custom_call.1} parent=35 // pred_region
          %s402 = ssub.s32 128, 128
          %403 = vsyncadd %s394, %s402
          %s404 = smul.addr %s19, 2
          %s405 = smul.addr %s404, 64
          %s406 = scalar_lea.hbm %s4, %s405
          %s408 = sshll.u32 %s397, 4
          %s409 = int_to_ptr.vmem [resolvable:$true] %s408
          %411 = dma.vmem_to_hbm [thread:$0]  %s409, 128, %s406, %s394
        $region40: #{tpu_custom_call.1} parent=35 // pred_fallthru
          _
      $region36: #{tpu_custom_call.1} parent=5 // pred_fallthru
        _
      %p412 = scmp.le.s32.totalorder 2, %s14
      // Predicated region
      $region41: #{tpu_custom_call.1} parent=5 // pred_check
        %p413 = pneg %p412
      $region42: #{tpu_custom_call.1} parent=5 // pred_check_branch
        %415 = sbr.rel (%p413) target = $region44
      $region43: #{tpu_custom_call.1} parent=5 // pred_region
        %s416 = ssub.s32 %s14, 2
        // Predicated region
        $region45: #{tpu_custom_call.1} parent=43 // pred_check
          %p417 = pneg %p132
        $region46: #{tpu_custom_call.1} parent=43 // pred_check_branch
          %419 = sbr.rel (%p417) target = $region48
        $region47: #{tpu_custom_call.1} parent=43 // pred_region
          %s420 = sand.u32 %s117, 1
          %s421 = scalar_lea.sflag [#allocation4], %s420
          %s422 = sand.u32 %s117, 1
          %s423 = smul.addr %s422, 8
          %s424 = scalar_lea.vmem [#allocation3], %s423
          %425 = dma.done %s421, 128
        $region48: #{tpu_custom_call.1} parent=43 // pred_fallthru
          _
      $region44: #{tpu_custom_call.1} parent=5 // pred_fallthru
        _
    $region6: #{tpu_custom_call.1} parent=1 // loop_footer
      %s18 = sadd.s32 1, %s14
    $region7: #{tpu_custom_call.1} parent=1 // loop_footer_branch
      %13 = sbr.rel target = $region3
    $region8: #{tpu_custom_call.1} parent=1 // loop_exit
      _
    %426 = vsyncpa [#allocation4], 1
    %s427 = scalar_lea.sflag [#allocation4], 1
    %428 = vsyncpa %s427, 1

</llo_original>
